<compile_context>
chip_gen: v7x
topology: tpu7x:2x2x1
jax: 0.10.0
libtpu: 0.0.40
codegen_flags: <defaults>
</compile_context>

<pallas_src>
import functools
import math

import jax
import jax.numpy as jnp
from jax.experimental import pallas as pl
from jax.experimental.pallas import tpu as pltpu


# Large finite negative bias instead of -inf (avoids NaN for fully-masked rows).
_MASK_BIAS = -0.7 * float(jnp.finfo(jnp.float32).max)


def _mha_kernel(block_b, seq, head_dim, num_heads,
                x_ref, bias_ref,
                wqkv_ref, bqkv_ref, wo_ref, bo_ref,
                o_ref):
    # x_ref:    (Bt, S, Din) bf16 (already masked)     bias_ref: (Bt, 1, S) f32
    # wqkv_ref: (H, Din, 3*hd) bf16 (q-scale folded)   bqkv_ref: (H, 1, 3*hd) f32
    # wo_ref:   (H, hd, E) bf16                        bo_ref:   (1, 1, E) f32
    # o_ref:    (Bt, S, E) f32  -- resident accumulator across the head axis
    h = pl.program_id(1)
    hd = head_dim

    x2 = x_ref[...].reshape(block_b * seq, -1)                  # (Bt*S, Din) bf16

    # Fused q/k/v projection for head h (weights VMEM-resident, f32 accumulate).
    qkv = jnp.dot(x2, wqkv_ref[h], preferred_element_type=jnp.float32)
    qkv = qkv + bqkv_ref[h]                                     # (Bt*S, 3*hd)

    q3 = qkv[:, :hd].reshape(block_b, seq, hd).astype(jnp.bfloat16)
    k3 = qkv[:, hd:2 * hd].reshape(block_b, seq, hd).astype(jnp.bfloat16)
    v3 = qkv[:, 2 * hd:].reshape(block_b, seq, hd).astype(jnp.bfloat16)

    # Attention logits (single batched dot_general, no transposes) + key-mask bias.
    logits = jnp.einsum('bqd,bkd->bqk', q3, k3,
                        preferred_element_type=jnp.float32)     # (Bt, S, S)
    logits = logits + bias_ref[...]                             # (Bt, 1, S) bcast

    # Softmax in f32; normalization deferred until after the PV matmul so the
    # divide is O(S*hd) instead of O(S^2).
    m = jnp.max(logits, axis=-1, keepdims=True)
    e = jnp.exp(logits - m)
    s = jnp.sum(e, axis=-1, keepdims=True)

    vals = jnp.einsum('bqk,bkd->bqd', e.astype(jnp.bfloat16), v3,
                      preferred_element_type=jnp.float32)       # (Bt, S, hd)
    vals = vals * pl.reciprocal(s, approx=True)                 # EUP reciprocal

    # Per-head slice of the output projection; the head "concat" is fused into
    # an accumulation directly in the resident output tile.
    part = jnp.dot(vals.reshape(block_b * seq, hd).astype(jnp.bfloat16),
                   wo_ref[h], preferred_element_type=jnp.float32)
    part = part.reshape(block_b, seq, -1)                       # (Bt, S, E)

    @pl.when(h == 0)
    def _():
        o_ref[...] = jnp.zeros_like(o_ref)

    o_ref[...] += part

    @pl.when(h == num_heads - 1)
    def _():
        o_ref[...] += bo_ref[...]


def _vmem_capacity_bytes():
    """Physical VMEM per core; conservative (v7x) fallback if query fails."""
    try:
        info = pltpu.get_tpu_info()
        cap = getattr(info, "vmem_capacity_bytes", None)
        if cap:
            return int(cap)
    except Exception:
        pass
    return 64 * 1024 * 1024


def _estimate_vmem_bytes(block_b, S, Din, E, H, hd):
    """Rough upper bound of VMEM live bytes for one grid step."""
    bts = block_b * S
    resident = (H * Din * 3 * hd * 2        # fused qkv weights (bf16)
                + H * 3 * hd * 4            # qkv bias (f32)
                + H * hd * E * 2            # per-head o-proj weights (bf16)
                + E * 4)                    # o-proj bias
    streamed = (2 * bts * Din * 2           # x tile, bf16, double-buffered
                + 2 * block_b * S * 4       # mask-bias tile, double-buffered
                + 2 * bts * E * 4)          # output tile, f32, double-buffered
    temporaries = (bts * 3 * hd * 4         # fused qkv activations (f32)
                   + 3 * bts * hd * 2       # q3/k3/v3 (bf16)
                   + 3 * block_b * S * S * 4  # logits + e (f32) + e (bf16, rounded up)
                   + 2 * bts * hd * 4       # PV result (unnormalized + normalized)
                   + bts * E * 4)           # per-head o-proj partial
    return resident + streamed + temporaries


def _pick_block_b(B, S, Din, E, H, hd, budget):
    divisors = [d for d in range(1, B + 1) if B % d == 0]
    fitting = [d for d in divisors
               if _estimate_vmem_bytes(d, S, Din, E, H, hd) <= budget]
    block_b = max(fitting) if fitting else 1
    # Prefer >= 2 grid steps on the "parallel" batch axis (keeps both
    # TensorCores busy on megacore parts) as long as that still fits.
    if B >= 2 and B // block_b < 2:
        smaller = [d for d in (fitting if fitting else divisors) if B // d >= 2]
        if smaller:
            block_b = max(smaller)
    return block_b


def multihead_attention(x, mask, w_qkv, b_qkv, w_o, b_o, *, num_heads,
                        block_b=None):
    """Forward pass of the mpnst MultiheadAttention module.

    x:     (B, S, Din) f32
    mask:  (B, S)      (1.0 = masked position)
    w_qkv: (3E, Din), b_qkv: (3E,)   -- PyTorch nn.Linear (out, in) convention
    w_o:   (E, E),    b_o:   (E,)
    """
    B, S, Din = x.shape
    three_e = w_qkv.shape[0]
    E = three_e // 3
    assert three_e == 3 * E and E % num_heads == 0
    H = num_heads
    hd = E // H
    # NOTE: S a multiple of 8 keeps the (Bt,S,.) <-> (Bt*S,.) reshapes layout no-ops.

    phys_vmem = _vmem_capacity_bytes()
    budget = int(phys_vmem * 0.70)          # leave headroom for spills/pipeline
    if block_b is None:
        block_b = _pick_block_b(B, S, Din, E, H, hd, budget)
    assert B % block_b == 0

    est = _estimate_vmem_bytes(block_b, S, Din, E, H, hd)
    vmem_limit = int(min(0.9 * phys_vmem, max(2 * est, 32 * 1024 * 1024)))

    # ---- One-time weight re-layout (no in-kernel transposes). ---------------
    # The module computes qkv.reshape(B, S, H, 3*hd).chunk(3, -1): the 3E output
    # rows of w_qkv are laid out per head as [q_h | k_h | v_h] blocks.
    scale = float(hd) ** (-0.5)
    type_scale = jnp.array([scale, 1.0, 1.0], jnp.float32)      # fold scale into q
    w_r = w_qkv.reshape(H, 3, hd, Din).astype(jnp.float32) * type_scale.reshape(1, 3, 1, 1)
    w_qkv_h = jnp.transpose(w_r.reshape(H, 3 * hd, Din), (0, 2, 1)).astype(jnp.bfloat16)
    b_r = b_qkv.reshape(H, 3, hd).astype(jnp.float32) * type_scale.reshape(1, 3, 1)
    b_qkv_h = b_r.reshape(H, 1, 3 * hd)

    # o_proj consumes values whose column index is h*hd + d, so w_o.T reshapes
    # cleanly into per-head (hd, E) blocks.
    w_o_h = jnp.transpose(w_o, (1, 0)).reshape(H, hd, E).astype(jnp.bfloat16)
    b_o3 = b_o.reshape(1, 1, E).astype(jnp.float32)

    # Pre-mask + bf16-cast x once in the wrapper; additive finite key-mask bias.
    mask_f = mask.astype(jnp.float32)
    x_masked = (x * (1.0 - mask_f)[..., None]).astype(jnp.bfloat16)   # (B, S, Din)
    bias = (mask_f * _MASK_BIAS).reshape(B, 1, S)

    kernel = functools.partial(_mha_kernel, block_b, S, hd, H)
    grid = (B // block_b, H)

    return pl.pallas_call(
        kernel,
        out_shape=jax.ShapeDtypeStruct((B, S, E), jnp.float32),
        grid_spec=pltpu.PrefetchScalarGridSpec(
            num_scalar_prefetch=0,
            grid=grid,
            in_specs=[
                # streamed per batch tile (index constant across h -> no re-DMA)
                pl.BlockSpec((block_b, S, Din), lambda b, h: (b, 0, 0)),   # x (bf16)
                pl.BlockSpec((block_b, 1, S),   lambda b, h: (b, 0, 0)),   # mask bias
                # VMEM-resident weights: fetched once for the whole kernel run
                pl.BlockSpec((H, Din, 3 * hd),  lambda b, h: (0, 0, 0)),   # w_qkv
                pl.BlockSpec((H, 1, 3 * hd),    lambda b, h: (0, 0, 0)),   # b_qkv
                pl.BlockSpec((H, hd, E),        lambda b, h: (0, 0, 0)),   # w_o
                pl.BlockSpec((1, 1, E),         lambda b, h: (0, 0, 0)),   # b_o
            ],
            out_specs=pl.BlockSpec((block_b, S, E), lambda b, h: (b, 0, 0)),
        ),
        compiler_params=pltpu.CompilerParams(
            dimension_semantics=("parallel", "arbitrary"),
            vmem_limit_bytes=vmem_limit),
    )(x_masked, bias, w_qkv_h, b_qkv_h, w_o_h, b_o3)


def _xavier_uniform(key, shape):
    fan_out, fan_in = shape
    limit = math.sqrt(6.0 / (fan_in + fan_out))
    return jax.random.uniform(key, shape, jnp.float32, -limit, limit)


def _reference(x, mask, w_qkv, b_qkv, w_o, b_o, num_heads):
    """Pure-JAX f32 reference matching the PyTorch module exactly."""
    B, S, _ = x.shape
    E = w_o.shape[0]
    hd = E // num_heads
    xm = x * (1.0 - mask)[..., None]
    qkv = xm @ w_qkv.T + b_qkv                              # (B, S, 3E)
    qkv = qkv.reshape(B, S, num_heads, 3 * hd).transpose(0, 2, 1, 3)
    q, k, v = qkv[..., :hd], qkv[..., hd:2 * hd], qkv[..., 2 * hd:]
    logits = jnp.einsum('bhqd,bhkd->bhqk', q, k) * hd ** (-0.5)
    logits = jnp.where((mask > 0)[:, None, None, :], -jnp.inf, logits)
    attn = jax.nn.softmax(logits, axis=-1)
    vals = jnp.einsum('bhqk,bhkd->bhqd', attn, v)
    vals = vals.transpose(0, 2, 1, 3).reshape(B, S, E)
    return vals @ w_o.T + b_o


if __name__ == "__main__":
    B, S, D_IN, E, H = 2, 8, 32, 32, 4

    key = jax.random.PRNGKey(0)
    k_x, k_qkv, k_o, k_bq, k_bo = jax.random.split(key, 5)

    x = jax.random.normal(k_x, (B, S, D_IN), jnp.float32)
    # mask: 1.0 = masked position; keep some unmasked keys per row.
    mask = jnp.zeros((B, S), jnp.float32).at[:, -2:].set(1.0)

    w_qkv = _xavier_uniform(k_qkv, (3 * E, D_IN))
    b_qkv = 0.1 * jax.random.normal(k_bq, (3 * E,), jnp.float32)
    w_o = _xavier_uniform(k_o, (E, E))
    b_o = 0.1 * jax.random.normal(k_bo, (E,), jnp.float32)

    out = multihead_attention(x, mask, w_qkv, b_qkv, w_o, b_o, num_heads=H)
    out = jax.block_until_ready(out)

    ref = _reference(x, mask, w_qkv, b_qkv, w_o, b_o, H)
    assert out.shape == (B, S, E)
    # bf16 MXU operands + approx reciprocal vs an all-f32 reference.
    err = float(jnp.max(jnp.abs(out - ref)))
    assert err < 3e-2, f"mismatch vs reference, max abs err = {err}"

    print("KERNEL_OK")
</pallas_src>

<mosaic_0001>
module attributes {stable_mosaic.version = 11 : i64} {
  func.func @_mha_kernel(%arg0: i32, %arg1: i32, %arg2: memref<1x8x32xbf16, #tpu.memory_space<vmem>>, %arg3: memref<1x1x8xf32, #tpu.memory_space<vmem>>, %arg4: memref<4x32x24xbf16, #tpu.memory_space<vmem>>, %arg5: memref<4x1x24xf32, #tpu.memory_space<vmem>>, %arg6: memref<4x8x32xbf16, #tpu.memory_space<vmem>>, %arg7: memref<1x1x32xf32, #tpu.memory_space<vmem>>, %arg8: memref<1x8x32xf32, #tpu.memory_space<vmem>>) attributes {dimension_semantics = [#tpu.dimension_semantics<parallel>, #tpu.dimension_semantics<arbitrary>], iteration_bounds = array<i64: 2, 4>, scalar_prefetch = 0 : i64, scratch_operands = 0 : i64, tpu.core_type = #tpu.core_type<tc>, window_params = [{transform_indices = @transform_0, window_bounds = array<i64: 1, 8, 32>}, {transform_indices = @transform_1, window_bounds = array<i64: 1, 1, 8>}, {pipeline_mode = #tpu.pipeline_mode<synchronous>, transform_indices = @transform_2, window_bounds = array<i64: 4, 32, 24>}, {pipeline_mode = #tpu.pipeline_mode<synchronous>, transform_indices = @transform_3, window_bounds = array<i64: 4, 1, 24>}, {pipeline_mode = #tpu.pipeline_mode<synchronous>, transform_indices = @transform_4, window_bounds = array<i64: 4, 8, 32>}, {pipeline_mode = #tpu.pipeline_mode<synchronous>, transform_indices = @transform_5, window_bounds = array<i64: 1, 1, 32>}, {transform_indices = @transform_6, window_bounds = array<i64: 1, 8, 32>}]} {
    %c0 = arith.constant 0 : index
    %c0_0 = arith.constant 0 : index
    %c0_1 = arith.constant 0 : index
    %0 = vector.load %arg2[%c0, %c0_0, %c0_1] : memref<1x8x32xbf16, #tpu.memory_space<vmem>>, vector<1x8x32xbf16>
    %1 = vector.shape_cast %0 : vector<1x8x32xbf16> to vector<8x32xbf16>
    %2 = arith.index_cast %arg1 : i32 to index
    %c0_2 = arith.constant 0 : index
    %c0_3 = arith.constant 0 : index
    %3 = vector.load %arg4[%2, %c0_2, %c0_3] : memref<4x32x24xbf16, #tpu.memory_space<vmem>>, vector<1x32x24xbf16>
    %4 = vector.shape_cast %3 : vector<1x32x24xbf16> to vector<32x24xbf16>
    %cst = arith.constant dense<0.000000e+00> : vector<8x24xf32>
    %5 = tpu.matmul %1, %4, %cst {dimension_numbers = #tpu.dot_dimension_numbers<[1], [0], [0], [1], [0, 0, 1, 1], [], []>} : vector<8x32xbf16>, vector<32x24xbf16>, vector<8x24xf32> -> vector<8x24xf32>
    %6 = arith.index_cast %arg1 : i32 to index
    %c0_4 = arith.constant 0 : index
    %c0_5 = arith.constant 0 : index
    %7 = vector.load %arg5[%6, %c0_4, %c0_5] : memref<4x1x24xf32, #tpu.memory_space<vmem>>, vector<1x1x24xf32>
    %8 = vector.shape_cast %7 : vector<1x1x24xf32> to vector<1x24xf32>
    %9 = vector.broadcast %8 : vector<1x24xf32> to vector<8x24xf32>
    %10 = arith.addf %5, %9 : vector<8x24xf32>
    %11 = vector.extract_strided_slice %10 {offsets = [0, 0], sizes = [8, 8], strides = [1, 1]} : vector<8x24xf32> to vector<8x8xf32>
    %12 = vector.shape_cast %11 : vector<8x8xf32> to vector<1x8x8xf32>
    %13 = arith.truncf %12 : vector<1x8x8xf32> to vector<1x8x8xbf16>
    %14 = vector.extract_strided_slice %10 {offsets = [0, 8], sizes = [8, 8], strides = [1, 1]} : vector<8x24xf32> to vector<8x8xf32>
    %15 = vector.shape_cast %14 : vector<8x8xf32> to vector<1x8x8xf32>
    %16 = arith.truncf %15 : vector<1x8x8xf32> to vector<1x8x8xbf16>
    %17 = vector.extract_strided_slice %10 {offsets = [0, 16], sizes = [8, 8], strides = [1, 1]} : vector<8x24xf32> to vector<8x8xf32>
    %18 = vector.shape_cast %17 : vector<8x8xf32> to vector<1x8x8xf32>
    %19 = arith.truncf %18 : vector<1x8x8xf32> to vector<1x8x8xbf16>
    "tpu.trace_start"() <{level = 10 : i32, message = "bqd,bkd->bqk"}> : () -> ()
    %cst_6 = arith.constant dense<0.000000e+00> : vector<1x8x8xf32>
    %20 = tpu.matmul %13, %16, %cst_6 {dimension_numbers = #tpu.dot_dimension_numbers<[2], [2], [1], [1], [0, 0, 0, 1, 1, 1], [0], [0]>} : vector<1x8x8xbf16>, vector<1x8x8xbf16>, vector<1x8x8xf32> -> vector<1x8x8xf32>
    "tpu.trace_stop"() : () -> ()
    %c0_7 = arith.constant 0 : index
    %c0_8 = arith.constant 0 : index
    %c0_9 = arith.constant 0 : index
    %21 = vector.load %arg3[%c0_7, %c0_8, %c0_9] : memref<1x1x8xf32, #tpu.memory_space<vmem>>, vector<1x1x8xf32>
    %22 = vector.broadcast %21 : vector<1x1x8xf32> to vector<1x8x8xf32>
    %23 = arith.addf %20, %22 : vector<1x8x8xf32>
    %cst_10 = arith.constant dense<0xFF800000> : vector<1x8xf32>
    %24 = vector.multi_reduction <maximumf>, %23, %cst_10 [2] : vector<1x8x8xf32> to vector<1x8xf32>
    %25 = vector.shape_cast %24 : vector<1x8xf32> to vector<1x8x1xf32>
    %26 = vector.broadcast %25 : vector<1x8x1xf32> to vector<1x8x8xf32>
    %27 = arith.subf %23, %26 : vector<1x8x8xf32>
    %28 = math.exp %27 : vector<1x8x8xf32>
    %cst_11 = arith.constant dense<0.000000e+00> : vector<1x8xf32>
    %29 = vector.multi_reduction <add>, %28, %cst_11 [2] : vector<1x8x8xf32> to vector<1x8xf32>
    %30 = vector.shape_cast %29 : vector<1x8xf32> to vector<1x8x1xf32>
    %31 = arith.truncf %28 : vector<1x8x8xf32> to vector<1x8x8xbf16>
    "tpu.trace_start"() <{level = 10 : i32, message = "bqk,bkd->bqd"}> : () -> ()
    %cst_12 = arith.constant dense<0.000000e+00> : vector<1x8x8xf32>
    %32 = tpu.matmul %31, %19, %cst_12 {dimension_numbers = #tpu.dot_dimension_numbers<[2], [1], [1], [2], [0, 0, 0, 1, 1, 2], [0], [0]>} : vector<1x8x8xbf16>, vector<1x8x8xbf16>, vector<1x8x8xf32> -> vector<1x8x8xf32>
    "tpu.trace_stop"() : () -> ()
    %33 = tpu.reciprocal %30 {approx = true} : vector<1x8x1xf32> -> vector<1x8x1xf32>
    %34 = vector.broadcast %33 : vector<1x8x1xf32> to vector<1x8x8xf32>
    %35 = arith.mulf %32, %34 : vector<1x8x8xf32>
    %36 = vector.shape_cast %35 : vector<1x8x8xf32> to vector<8x8xf32>
    %37 = arith.truncf %36 : vector<8x8xf32> to vector<8x8xbf16>
    %38 = arith.index_cast %arg1 : i32 to index
    %c0_13 = arith.constant 0 : index
    %c0_14 = arith.constant 0 : index
    %39 = vector.load %arg6[%38, %c0_13, %c0_14] : memref<4x8x32xbf16, #tpu.memory_space<vmem>>, vector<1x8x32xbf16>
    %40 = vector.shape_cast %39 : vector<1x8x32xbf16> to vector<8x32xbf16>
    %cst_15 = arith.constant dense<0.000000e+00> : vector<8x32xf32>
    %41 = tpu.matmul %37, %40, %cst_15 {dimension_numbers = #tpu.dot_dimension_numbers<[1], [0], [0], [1], [0, 0, 1, 1], [], []>} : vector<8x8xbf16>, vector<8x32xbf16>, vector<8x32xf32> -> vector<8x32xf32>
    %42 = vector.shape_cast %41 : vector<8x32xf32> to vector<1x8x32xf32>
    %c0_i32 = arith.constant 0 : i32
    %43 = arith.cmpi eq, %arg1, %c0_i32 : i32
    %44 = arith.extui %43 : i1 to i32
    %c0_i32_16 = arith.constant 0 : i32
    %45 = arith.cmpi ne, %44, %c0_i32_16 : i32
    scf.if %45 {
      %cst_24 = arith.constant 0.000000e+00 : f32
      %52 = vector.broadcast %cst_24 : f32 to vector<1x8x32xf32>
      %c0_25 = arith.constant 0 : index
      %c0_26 = arith.constant 0 : index
      %c0_27 = arith.constant 0 : index
      %53 = vector.load %arg8[%c0_25, %c0_26, %c0_27] : memref<1x8x32xf32, #tpu.memory_space<vmem>>, vector<1x8x32xf32>
      tpu.vector_store %arg8[%c0_25, %c0_26, %c0_27], %52 {strides = array<i32>} : memref<1x8x32xf32, #tpu.memory_space<vmem>>, vector<1x8x32xf32>,
    } else {
    }
    %c0_17 = arith.constant 0 : index
    %c0_18 = arith.constant 0 : index
    %c0_19 = arith.constant 0 : index
    %46 = vector.load %arg8[%c0_17, %c0_18, %c0_19] : memref<1x8x32xf32, #tpu.memory_space<vmem>>, vector<1x8x32xf32>
    %47 = arith.addf %46, %42 : vector<1x8x32xf32>
    %c0_20 = arith.constant 0 : index
    %c0_21 = arith.constant 0 : index
    %c0_22 = arith.constant 0 : index
    %48 = vector.load %arg8[%c0_20, %c0_21, %c0_22] : memref<1x8x32xf32, #tpu.memory_space<vmem>>, vector<1x8x32xf32>
    tpu.vector_store %arg8[%c0_20, %c0_21, %c0_22], %47 {strides = array<i32>} : memref<1x8x32xf32, #tpu.memory_space<vmem>>, vector<1x8x32xf32>,
    %c3_i32 = arith.constant 3 : i32
    %49 = arith.cmpi eq, %arg1, %c3_i32 : i32
    %50 = arith.extui %49 : i1 to i32
    %c0_i32_23 = arith.constant 0 : i32
    %51 = arith.cmpi ne, %50, %c0_i32_23 : i32
    scf.if %51 {
      %c0_24 = arith.constant 0 : index
      %c0_25 = arith.constant 0 : index
      %c0_26 = arith.constant 0 : index
      %52 = vector.load %arg8[%c0_24, %c0_25, %c0_26] : memref<1x8x32xf32, #tpu.memory_space<vmem>>, vector<1x8x32xf32>
      %c0_27 = arith.constant 0 : index
      %c0_28 = arith.constant 0 : index
      %c0_29 = arith.constant 0 : index
      %53 = vector.load %arg7[%c0_27, %c0_28, %c0_29] : memref<1x1x32xf32, #tpu.memory_space<vmem>>, vector<1x1x32xf32>
      %54 = vector.broadcast %53 : vector<1x1x32xf32> to vector<1x8x32xf32>
      %55 = arith.addf %52, %54 : vector<1x8x32xf32>
      %c0_30 = arith.constant 0 : index
      %c0_31 = arith.constant 0 : index
      %c0_32 = arith.constant 0 : index
      %56 = vector.load %arg8[%c0_30, %c0_31, %c0_32] : memref<1x8x32xf32, #tpu.memory_space<vmem>>, vector<1x8x32xf32>
      tpu.vector_store %arg8[%c0_30, %c0_31, %c0_32], %55 {strides = array<i32>} : memref<1x8x32xf32, #tpu.memory_space<vmem>>, vector<1x8x32xf32>,
    } else {
    }
    return
  }
  func.func @transform_0(%arg0: i32, %arg1: i32) -> (i32, i32, i32) {
    %c0_i32 = arith.constant 0 : i32
    %c0_i32_0 = arith.constant 0 : i32
    %c0_i32_1 = arith.constant 0 : i32
    return %arg0, %c0_i32, %c0_i32_0 : i32, i32, i32
  }
  func.func @transform_1(%arg0: i32, %arg1: i32) -> (i32, i32, i32) {
    %c0_i32 = arith.constant 0 : i32
    %c0_i32_0 = arith.constant 0 : i32
    %c0_i32_1 = arith.constant 0 : i32
    return %arg0, %c0_i32, %c0_i32_0 : i32, i32, i32
  }
  func.func @transform_2(%arg0: i32, %arg1: i32) -> (i32, i32, i32) {
    %c0_i32 = arith.constant 0 : i32
    %c0_i32_0 = arith.constant 0 : i32
    %c0_i32_1 = arith.constant 0 : i32
    %c0_i32_2 = arith.constant 0 : i32
    return %c0_i32, %c0_i32_0, %c0_i32_1 : i32, i32, i32
  }
  func.func @transform_3(%arg0: i32, %arg1: i32) -> (i32, i32, i32) {
    %c0_i32 = arith.constant 0 : i32
    %c0_i32_0 = arith.constant 0 : i32
    %c0_i32_1 = arith.constant 0 : i32
    %c0_i32_2 = arith.constant 0 : i32
    return %c0_i32, %c0_i32_0, %c0_i32_1 : i32, i32, i32
  }
  func.func @transform_4(%arg0: i32, %arg1: i32) -> (i32, i32, i32) {
    %c0_i32 = arith.constant 0 : i32
    %c0_i32_0 = arith.constant 0 : i32
    %c0_i32_1 = arith.constant 0 : i32
    %c0_i32_2 = arith.constant 0 : i32
    return %c0_i32, %c0_i32_0, %c0_i32_1 : i32, i32, i32
  }
  func.func @transform_5(%arg0: i32, %arg1: i32) -> (i32, i32, i32) {
    %c0_i32 = arith.constant 0 : i32
    %c0_i32_0 = arith.constant 0 : i32
    %c0_i32_1 = arith.constant 0 : i32
    %c0_i32_2 = arith.constant 0 : i32
    return %c0_i32, %c0_i32_0, %c0_i32_1 : i32, i32, i32
  }
  func.func @transform_6(%arg0: i32, %arg1: i32) -> (i32, i32, i32) {
    %c0_i32 = arith.constant 0 : i32
    %c0_i32_0 = arith.constant 0 : i32
    %c0_i32_1 = arith.constant 0 : i32
    return %arg0, %c0_i32, %c0_i32_0 : i32, i32, i32
  }
}

</mosaic_0001>

<llo_original>
// kernel: tpu_custom_call.1
$region0: #{tpu_custom_call.1}
  #allocation0 [shape = 'u32[]', space=smem, size = 0x4, offset = 0x4, fixed_abs, tag = 'smem constant byte address 0x4 - core index']
  #allocation1 [shape = 'u32[144,128]{1,0:T(1,128)}', space=vmem, size = 0x12000, scoped, tag = 'internal scratch']
  %s0 = inlined_call_operand.vmem [shape: bf16[2,8,32], index: 0, kind: input, shape index: {}]
  %s1 = inlined_call_operand.vmem [shape: f32[2,1,8], index: 1, kind: input, shape index: {}]
  %s2 = inlined_call_operand.vmem [shape: bf16[4,32,24], index: 2, kind: input, shape index: {}]
  %s3 = inlined_call_operand.vmem [shape: f32[4,1,24], index: 3, kind: input, shape index: {}]
  %s4 = inlined_call_operand.vmem [shape: bf16[4,8,32], index: 4, kind: input, shape index: {}]
  %s5 = inlined_call_operand.vmem [shape: f32[1,1,32], index: 5, kind: input, shape index: {}]
  %s6 = inlined_call_operand.hbm [shape: f32[2,8,32], index: 6, kind: output, shape index: {}]
  %s7 = sld [smem:[#allocation0]]
  $region65: #{tpu_custom_call.1} parent=0
    _
  %s9 = ssub.s32 1, %s7
  %s10 = scalar_select 0, %s9, %s7
  $region1: #{tpu_custom_call.1} parent=0
    #allocation2 [shape = 'u8[8192]{0}', space=vmem, size = 0x2000, scoped, tag = 'output window, operand 0']
    #allocation3 [shape = 's32[2]{0}', space=sflag, size = 0x8, scoped, tag = 'scoped memory for tpu_custom_call.1']
    %11 = vsyncpa [#allocation3], 0
    %s12 = scalar_lea.sflag [#allocation3], 1
    %13 = vsyncpa %s12, 0
    loop: start=0, step=1, limit=10
    $region2: #{tpu_custom_call.1} parent=1 // loop_pre_header
      _
    $region3: #{tpu_custom_call.1} parent=1 // loop_header
      %s15 = sphi 0, %s19
      %p16 = scmp.ge.s32.totalorder %s15, 10
      %s22 = sphi 0, %s34
      %s23 = sphi 0, %s30
      %s24 = sphi 0, %s22
      %s25 = sphi 0, %s23
      %s26 = sphi 0, %s24
      %s27 = sphi 0, %s25
      %s37 = sphi 0, %s39
      %s40 = sphi 0, %s37
      %s41 = sphi 0, %s40
      %s57 = sphi 0, %s41
      %s63 = sphi 0, %s65
      %s66 = sphi 0, %s63
      %s67 = sphi 0, %s66
      %s83 = sphi 0, %s67
      %s87 = sphi 0, %s87
      %s89 = sphi 0, %s87
      %s90 = sphi 0, %s89
      %s104 = sphi 0, %s90
      %s108 = sphi 0, %s108
      %s110 = sphi 0, %s108
      %s111 = sphi 0, %s110
      %s125 = sphi 0, %s111
      %s129 = sphi 0, %s129
      %s131 = sphi 0, %s129
      %s132 = sphi 0, %s131
      %s146 = sphi 0, %s132
      %s150 = sphi 0, %s150
      %s152 = sphi 0, %s150
      %s153 = sphi 0, %s152
      %s167 = sphi 0, %s153
      %s173 = sphi 0, %s175
      %s176 = sphi 0, %s173
      %s177 = sphi 0, %s176
      %s193 = sphi 0, %s177
    $region4: #{tpu_custom_call.1} parent=1 // loop_header_branch
      %18 = sbr.rel (%p16) target = $region8
    $region5: #{tpu_custom_call.1} parent=1 // loop_body
      %s20 = ssub.s32 %s15, 1
      %s21 = ssub.s32 %s15, 2
      %s28 = sadd.s32 1, %s23
      %p29 = scmp.ge.s32.totalorder %s28, 4
      %s30 = scalar_select %p29, 0, %s28
      %s31 = sadd.s32 1, %s22
      %s32 = scalar_select %p29, %s31, %s22
      %p33 = scmp.ge.s32.totalorder %s32, 2
      %s34 = scalar_select %p33, 0, %s32
      %s35 = ssub.s32 %s22, %s34
      %p36 = scmp.eq.s32.totalorder %s35, 0
      %s38 = sadd.s32 %s37, 1
      %s39 = scalar_select %p36, %s37, %s38
      %p42 = pneg %p36
      %p43 = scmp.eq.s32.totalorder %s15, 7
      %p44 = por %p42, %p43
      %p45 = scmp.ne.s32.totalorder %s37, %s40
      %p46 = scmp.eq.s32.totalorder %s15, 0
      %p47 = por %p45, %p46
      %p48 = scmp.ne.s32.totalorder %s37, %s40
      %p49 = scmp.eq.s32.totalorder %s20, 7
      %p50 = por %p48, %p49
      %p51 = scmp.ne.s32.totalorder %s40, %s41
      %p52 = scmp.eq.s32.totalorder %s20, 0
      %p53 = por %p51, %p52
      %p54 = scmp.ne.s32.totalorder %s40, %s41
      %p55 = scmp.eq.s32.totalorder %s21, 7
      %p56 = por %p54, %p55
      %p58 = scmp.ne.s32.totalorder %s41, %s57
      %p59 = scmp.eq.s32.totalorder %s21, 0
      %p60 = por %p58, %p59
      %s61 = ssub.s32 %s22, %s34
      %p62 = scmp.eq.s32.totalorder %s61, 0
      %s64 = sadd.s32 %s63, 1
      %s65 = scalar_select %p62, %s63, %s64
      %p68 = pneg %p62
      %p69 = scmp.eq.s32.totalorder %s15, 7
      %p70 = por %p68, %p69
      %p71 = scmp.ne.s32.totalorder %s63, %s66
      %p72 = scmp.eq.s32.totalorder %s15, 0
      %p73 = por %p71, %p72
      %p74 = scmp.ne.s32.totalorder %s63, %s66
      %p75 = scmp.eq.s32.totalorder %s20, 7
      %p76 = por %p74, %p75
      %p77 = scmp.ne.s32.totalorder %s66, %s67
      %p78 = scmp.eq.s32.totalorder %s20, 0
      %p79 = por %p77, %p78
      %p80 = scmp.ne.s32.totalorder %s66, %s67
      %p81 = scmp.eq.s32.totalorder %s21, 7
      %p82 = por %p80, %p81
      %p84 = scmp.ne.s32.totalorder %s67, %s83
      %p85 = scmp.eq.s32.totalorder %s21, 0
      %p86 = por %p84, %p85
      %s88 = sadd.s32 %s87, 1
      %p91 = scmp.eq.s32.totalorder %s15, 7
      %p92 = scmp.ne.s32.totalorder %s87, %s89
      %p93 = scmp.eq.s32.totalorder %s15, 0
      %p94 = por %p92, %p93
      %p95 = scmp.ne.s32.totalorder %s87, %s89
      %p96 = scmp.eq.s32.totalorder %s20, 7
      %p97 = por %p95, %p96
      %p98 = scmp.ne.s32.totalorder %s89, %s90
      %p99 = scmp.eq.s32.totalorder %s20, 0
      %p100 = por %p98, %p99
      %p101 = scmp.ne.s32.totalorder %s89, %s90
      %p102 = scmp.eq.s32.totalorder %s21, 7
      %p103 = por %p101, %p102
      %p105 = scmp.ne.s32.totalorder %s90, %s104
      %p106 = scmp.eq.s32.totalorder %s21, 0
      %p107 = por %p105, %p106
      %s109 = sadd.s32 %s108, 1
      %p112 = scmp.eq.s32.totalorder %s15, 7
      %p113 = scmp.ne.s32.totalorder %s108, %s110
      %p114 = scmp.eq.s32.totalorder %s15, 0
      %p115 = por %p113, %p114
      %p116 = scmp.ne.s32.totalorder %s108, %s110
      %p117 = scmp.eq.s32.totalorder %s20, 7
      %p118 = por %p116, %p117
      %p119 = scmp.ne.s32.totalorder %s110, %s111
      %p120 = scmp.eq.s32.totalorder %s20, 0
      %p121 = por %p119, %p120
      %p122 = scmp.ne.s32.totalorder %s110, %s111
      %p123 = scmp.eq.s32.totalorder %s21, 7
      %p124 = por %p122, %p123
      %p126 = scmp.ne.s32.totalorder %s111, %s125
      %p127 = scmp.eq.s32.totalorder %s21, 0
      %p128 = por %p126, %p127
      %s130 = sadd.s32 %s129, 1
      %p133 = scmp.eq.s32.totalorder %s15, 7
      %p134 = scmp.ne.s32.totalorder %s129, %s131
      %p135 = scmp.eq.s32.totalorder %s15, 0
      %p136 = por %p134, %p135
      %p137 = scmp.ne.s32.totalorder %s129, %s131
      %p138 = scmp.eq.s32.totalorder %s20, 7
      %p139 = por %p137, %p138
      %p140 = scmp.ne.s32.totalorder %s131, %s132
      %p141 = scmp.eq.s32.totalorder %s20, 0
      %p142 = por %p140, %p141
      %p143 = scmp.ne.s32.totalorder %s131, %s132
      %p144 = scmp.eq.s32.totalorder %s21, 7
      %p145 = por %p143, %p144
      %p147 = scmp.ne.s32.totalorder %s132, %s146
      %p148 = scmp.eq.s32.totalorder %s21, 0
      %p149 = por %p147, %p148
      %s151 = sadd.s32 %s150, 1
      %p154 = scmp.eq.s32.totalorder %s15, 7
      %p155 = scmp.ne.s32.totalorder %s150, %s152
      %p156 = scmp.eq.s32.totalorder %s15, 0
      %p157 = por %p155, %p156
      %p158 = scmp.ne.s32.totalorder %s150, %s152
      %p159 = scmp.eq.s32.totalorder %s20, 7
      %p160 = por %p158, %p159
      %p161 = scmp.ne.s32.totalorder %s152, %s153
      %p162 = scmp.eq.s32.totalorder %s20, 0
      %p163 = por %p161, %p162
      %p164 = scmp.ne.s32.totalorder %s152, %s153
      %p165 = scmp.eq.s32.totalorder %s21, 7
      %p166 = por %p164, %p165
      %p168 = scmp.ne.s32.totalorder %s153, %s167
      %p169 = scmp.eq.s32.totalorder %s21, 0
      %p170 = por %p168, %p169
      %s171 = ssub.s32 %s22, %s34
      %p172 = scmp.eq.s32.totalorder %s171, 0
      %s174 = sadd.s32 %s173, 1
      %s175 = scalar_select %p172, %s173, %s174
      %p178 = pneg %p172
      %p179 = scmp.eq.s32.totalorder %s15, 7
      %p180 = por %p178, %p179
      %p181 = scmp.ne.s32.totalorder %s173, %s176
      %p182 = scmp.eq.s32.totalorder %s15, 0
      %p183 = por %p181, %p182
      %p184 = scmp.ne.s32.totalorder %s173, %s176
      %p185 = scmp.eq.s32.totalorder %s20, 7
      %p186 = por %p184, %p185
      %p187 = scmp.ne.s32.totalorder %s176, %s177
      %p188 = scmp.eq.s32.totalorder %s20, 0
      %p189 = por %p187, %p188
      %p190 = scmp.ne.s32.totalorder %s176, %s177
      %p191 = scmp.eq.s32.totalorder %s21, 7
      %p192 = por %p190, %p191
      %p194 = scmp.ne.s32.totalorder %s177, %s193
      %p195 = scmp.eq.s32.totalorder %s21, 0
      %p196 = por %p194, %p195
      %p197 = scmp.le.s32.totalorder 1, %s15
      %p198 = scmp.lt.s32.totalorder %s15, 9
      %p199 = pnand %p197, %p198
      %p200 = pneg %p199
      // Predicated region
      $region9: #{tpu_custom_call.1} parent=5 // pred_check
        _
      $region10: #{tpu_custom_call.1} parent=5 // pred_check_branch
        %202 = sbr.rel (%p199) target = $region12
      $region11: #{tpu_custom_call.1} parent=5 // pred_region
        %s203 = ssub.s32 %s15, 1
        // Predicated region
        $region13: #{tpu_custom_call.1} parent=11 // pred_check
          %p204 = pneg %p100
        $region14: #{tpu_custom_call.1} parent=11 // pred_check_branch
          %206 = sbr.rel (%p204) target = $region16
        $region15: #{tpu_custom_call.1} parent=11 // pred_region
          _
        $region16: #{tpu_custom_call.1} parent=11 // pred_fallthru
          _
        // Predicated region
        $region17: #{tpu_custom_call.1} parent=11 // pred_check
          %p207 = pneg %p121
        $region18: #{tpu_custom_call.1} parent=11 // pred_check_branch
          %209 = sbr.rel (%p207) target = $region20
        $region19: #{tpu_custom_call.1} parent=11 // pred_region
          _
        $region20: #{tpu_custom_call.1} parent=11 // pred_fallthru
          _
        // Predicated region
        $region21: #{tpu_custom_call.1} parent=11 // pred_check
          %p210 = pneg %p142
        $region22: #{tpu_custom_call.1} parent=11 // pred_check_branch
          %212 = sbr.rel (%p210) target = $region24
        $region23: #{tpu_custom_call.1} parent=11 // pred_region
          _
        $region24: #{tpu_custom_call.1} parent=11 // pred_fallthru
          _
        // Predicated region
        $region25: #{tpu_custom_call.1} parent=11 // pred_check
          %p213 = pneg %p163
        $region26: #{tpu_custom_call.1} parent=11 // pred_check_branch
          %215 = sbr.rel (%p213) target = $region28
        $region27: #{tpu_custom_call.1} parent=11 // pred_region
          _
        $region28: #{tpu_custom_call.1} parent=11 // pred_fallthru
          _
      $region12: #{tpu_custom_call.1} parent=5 // pred_fallthru
        _
      %p216 = scmp.lt.s32.totalorder %s15, 8
      // Predicated region
      $region29: #{tpu_custom_call.1} parent=5 // pred_check
        %p217 = pneg %p216
      $region30: #{tpu_custom_call.1} parent=5 // pred_check_branch
        %219 = sbr.rel (%p217) target = $region32
      $region31: #{tpu_custom_call.1} parent=5 // pred_region
        // Predicated region
        $region33: #{tpu_custom_call.1} parent=31 // pred_check
          %p220 = pneg %p47
        $region34: #{tpu_custom_call.1} parent=31 // pred_check_branch
          %222 = sbr.rel (%p220) target = $region36
        $region35: #{tpu_custom_call.1} parent=31 // pred_region
          %p223 = scmp.lt.s32.totalorder %s22, 1
          %s224 = scalar_select %p223, %s22, 1
          %s225 = smul.addr %s224, 4
          %s226 = scalar_lea.vmem %s0, %s225
        $region36: #{tpu_custom_call.1} parent=31 // pred_fallthru
          _
        // Predicated region
        $region37: #{tpu_custom_call.1} parent=31 // pred_check
          %p227 = pneg %p73
        $region38: #{tpu_custom_call.1} parent=31 // pred_check_branch
          %229 = sbr.rel (%p227) target = $region40
        $region39: #{tpu_custom_call.1} parent=31 // pred_region
          %p230 = scmp.lt.s32.totalorder %s22, 1
          %s231 = scalar_select %p230, %s22, 1
          %s232 = scalar_lea.vmem %s1, %s231
        $region40: #{tpu_custom_call.1} parent=31 // pred_fallthru
          _
      $region32: #{tpu_custom_call.1} parent=5 // pred_fallthru
        _
      %p233 = scmp.le.s32.totalorder 1, %s15
      %p234 = scmp.lt.s32.totalorder %s15, 9
      %p235 = pnand %p233, %p234
      %p236 = pneg %p235
      // Predicated region
      $region41: #{tpu_custom_call.1} parent=5 // pred_check
        _
      $region42: #{tpu_custom_call.1} parent=5 // pred_check_branch
        %238 = sbr.rel (%p235) target = $region44
      $region43: #{tpu_custom_call.1} parent=5 // pred_region
        %s239 = ssub.s32 %s15, 1
        %p240 = scmp.lt.s32.totalorder %s24, 1
        %s241 = scalar_select %p240, %s24, 1
        %s242 = smul.addr %s241, 4
        %s243 = scalar_lea.vmem %s0, %s242
        %p244 = pneg %p53
        %p245 = pneg %p50
        %p246 = scmp.lt.s32.totalorder %s24, 1
        %s247 = scalar_select %p246, %s24, 1
        %s248 = scalar_lea.vmem %s1, %s247
        %p249 = pneg %p79
        %p250 = pneg %p76
        %p251 = pneg %p100
        %p252 = pneg %p97
        %p253 = pneg %p121
        %p254 = pneg %p118
        %p255 = pneg %p142
        %p256 = pneg %p139
        %p257 = pneg %p163
        %p258 = pneg %p160
        %p259 = pneg %p189
        %p260 = pneg %p186
        %s261 = sand.u32 %s176, 1
        %s262 = scalar_lea.sflag [#allocation3], %s261
        %s263 = sand.u32 %s176, 1
        %s264 = smul.addr %s263, 8
        %s265 = scalar_lea.vmem [#allocation2], %s264
        %p266 = scmp.lt.s32.totalorder %s24, 1
        %s267 = scalar_select %p266, %s24, 1
        %s268 = smul.addr %s267, 4
        %s269 = scalar_lea.vmem %s0, %s268
        %p270 = scmp.lt.s32.totalorder %s24, 1
        %s271 = scalar_select %p270, %s24, 1
        %s272 = scalar_lea.vmem %s1, %s271
        %v274 = vld [vmem:[%s269] sm:$0xf]
        %s275 = smul.u32 %s25, 4
        %s276 = smul.addr %s275, 4
        %s277 = scalar_lea.vmem %s2, %s276
        %v278 = vld [vmem:[%s277] sm:$0xf]
        %v279 = vld [vmem:[%s277 + $0x4] sm:$0xf]
        %v280 = vld [vmem:[%s277 + $0x8] sm:$0xf]
        %v281 = vld [vmem:[%s277 + $0xc] sm:$0xf]
        %s282 = scalar_lea.vmem %s3, %s25
        %v283 = vld [vmem:[%s282] sm:$0x1]
        %v285 = vlaneseq
        %v286 = vshrl.u32 %v285, 7
        %v287 = vsub.s32 0, %v286
        %v288 = vrot.slane %v283, %v287
        %v294 = vunpack.c.l.b16 %v278
        %v295 = vunpack.c.l.b16 %v279
        %v296 = vunpack.c.l.b16 %v280
        %v297 = vunpack.c.l.b16 %v281
        %v298 = vpack.c.b16 %v295, %v294
        %v299 = vpack.c.b16 %v297, %v296
        %vm302 = vcmask 261120
        %v304 = vsel %vm302, %v274, 0
        %306 = vmatprep.subr.bf16.mxu0 0
        %307 = vmatpush1.bf16.msra.mxu0 %v298
        %308 = vmatprep.subr.bf16.mxu0 0
        %309 = vmatpush1.bf16.msra.mxu0 %v299
        %310 = vmatprep.subr.bf16.mxu0 0
        %311 = vmatpush1.bf16.msra.mxu0 0
        %312 = vmatprep.subr.bf16.mxu0 0
        %313 = vmatpush1.bf16.msra.mxu0 0
        %314 = vmatprep.subr.bf16.mxu0 0
        %315 = vmatpush1.bf16.msra.mxu0 0
        %316 = vmatprep.subr.bf16.mxu0 0
        %317 = vmatpush1.bf16.msra.mxu0 0
        %318 = vmatprep.subr.bf16.mxu0 0
        %319 = vmatpush1.bf16.msra.mxu0 0
        %320 = vmatprep.subr.bf16.mxu0 0
        %321 = vmatpush1.bf16.msra.mxu0 0
        %322 = vmatprep.subr.bf16.mxu0 0
        %323 = vmatpush1.bf16.msra.mxu0 0
        %324 = vmatprep.subr.bf16.mxu0 0
        %325 = vmatpush1.bf16.msra.mxu0 0
        %326 = vmatprep.subr.bf16.mxu0 0
        %327 = vmatpush1.bf16.msra.mxu0 0
        %328 = vmatprep.subr.bf16.mxu0 0
        %329 = vmatpush1.bf16.msra.mxu0 0
        %330 = vmatprep.subr.bf16.mxu0 0
        %331 = vmatpush1.bf16.msra.mxu0 0
        %332 = vmatprep.subr.bf16.mxu0 0
        %333 = vmatpush1.bf16.msra.mxu0 0
        %334 = vmatprep.subr.bf16.mxu0 0
        %335 = vmatpush1.bf16.msra.mxu0 0
        %336 = vmatprep.subr.bf16.mxu0 0
        %337 = vmatpush1.bf16.msra.mxu0 0
        %338 = vmatprep.mubr.bf16.mxu0 0
        %339 = vmatmul.mubr.bf16.gmra.mrb[0].mxu0 %v304
        %v340 = vpop.f32.mrb[0].mxu0
        %v341 = vadd.f32 %v288, %v340
        %v342 = vpop.f32.mrb[0].mxu0
        %v343 = vpop.f32.mrb[0].mxu0
        %v344 = vpop.f32.mrb[0].mxu0
        %345 = vdwg.mxu0
        %v346 = vpack.c.bf16 %v341, %v341
        %v347 = vld [vmem:[%s272] sm:$0x1]
        %v349 = vlaneseq
        %v350 = vshrl.u32 %v349, 7
        %v351 = vsub.s32 0, %v350
        %v352 = vrot.slane %v347, %v351
        %355 = vrot.lane.b32.xlu0 %v346, 120
        %v356 = vpop.permute.xlu0 %355
        %vm357 = vcmask 64512
        %v359 = vsel %vm357, %v346, 0
        %v362 = vsel %vm357, %v356, 0
        %364 = vmatprep.subr.bf16.mxu0 0
        %365 = vmatpush1.bf16.xpose.msra.mxu0 %v362
        %366 = vmatprep.subr.bf16.mxu0 0
        %367 = vmatpush1.bf16.xpose.msra.mxu0 0
        %368 = vmatprep.subr.bf16.mxu0 0
        %369 = vmatpush1.bf16.xpose.msra.mxu0 0
        %370 = vmatprep.subr.bf16.mxu0 0
        %371 = vmatpush1.bf16.xpose.msra.mxu0 0
        %372 = vmatprep.subr.bf16.mxu0 0
        %373 = vmatpush1.bf16.xpose.msra.mxu0 0
        %374 = vmatprep.subr.bf16.mxu0 0
        %375 = vmatpush1.bf16.xpose.msra.mxu0 0
        %376 = vmatprep.subr.bf16.mxu0 0
        %377 = vmatpush1.bf16.xpose.msra.mxu0 0
        %378 = vmatprep.subr.bf16.mxu0 0
        %379 = vmatpush1.bf16.xpose.msra.mxu0 0
        %380 = vmatprep.subr.bf16.mxu0 0
        %381 = vmatpush1.bf16.xpose.msra.mxu0 0
        %382 = vmatprep.subr.bf16.mxu0 0
        %383 = vmatpush1.bf16.xpose.msra.mxu0 0
        %384 = vmatprep.subr.bf16.mxu0 0
        %385 = vmatpush1.bf16.xpose.msra.mxu0 0
        %386 = vmatprep.subr.bf16.mxu0 0
        %387 = vmatpush1.bf16.xpose.msra.mxu0 0
        %388 = vmatprep.subr.bf16.mxu0 0
        %389 = vmatpush1.bf16.xpose.msra.mxu0 0
        %390 = vmatprep.subr.bf16.mxu0 0
        %391 = vmatpush1.bf16.xpose.msra.mxu0 0
        %392 = vmatprep.subr.bf16.mxu0 0
        %393 = vmatpush1.bf16.xpose.msra.mxu0 0
        %394 = vmatprep.subr.bf16.mxu0 0
        %395 = vmatpush1.bf16.xpose.msra.mxu0 0
        %396 = vmatprep.mubr.bf16.mxu0 0
        %397 = vmatmul.mubr.bf16.gmra.mrb[0].mxu0 %v359
        %v398 = vpop.f32.mrb[0].mxu0
        %v399 = vadd.f32 %v352, %v398
        %v400 = vpop.f32.mrb[0].mxu0
        %v401 = vpop.f32.mrb[0].mxu0
        %v402 = vpop.f32.mrb[0].mxu0
        %403 = vdwg.mxu0
        %v404 = vsel %vm357, %v399, -inf
        %405 = vmax.xlane.f32.xlu0 %v404
        %v406 = vpop.xlane.xlu0 %405
        %v407 = vsub.f32 %v399, %v406
        %v408 = vmul.f32 %v407, 1.442695
        %v409 = vpow.pop %v408
        %v410 = vsel %vm357, %v409, 0.0
        %411 = vadd.xlane.f32.xlu0 %v410
        %v412 = vpop.xlane.xlu0 %411
        %v413 = vpack.c.bf16 %v409, %v409
        %414 = vrot.lane.b32.xlu0 %v346, 112
        %v415 = vpop.permute.xlu0 %414
        %v417 = vsel %vm357, %v413, 0
        %vm419 = vcmask 1043456
        %v421 = vsel %vm419, %v415, 0
        %423 = vmatprep.subr.bf16.mxu0 0
        %424 = vmatpush1.bf16.msra.mxu0 %v421
        %425 = vmatprep.subr.bf16.mxu0 0
        %426 = vmatpush1.bf16.msra.mxu0 0
        %427 = vmatprep.subr.bf16.mxu0 0
        %428 = vmatpush1.bf16.msra.mxu0 0
        %429 = vmatprep.subr.bf16.mxu0 0
        %430 = vmatpush1.bf16.msra.mxu0 0
        %431 = vmatprep.subr.bf16.mxu0 0
        %432 = vmatpush1.bf16.msra.mxu0 0
        %433 = vmatprep.subr.bf16.mxu0 0
        %434 = vmatpush1.bf16.msra.mxu0 0
        %435 = vmatprep.subr.bf16.mxu0 0
        %436 = vmatpush1.bf16.msra.mxu0 0
        %437 = vmatprep.subr.bf16.mxu0 0
        %438 = vmatpush1.bf16.msra.mxu0 0
        %439 = vmatprep.subr.bf16.mxu0 0
        %440 = vmatpush1.bf16.msra.mxu0 0
        %441 = vmatprep.subr.bf16.mxu0 0
        %442 = vmatpush1.bf16.msra.mxu0 0
        %443 = vmatprep.subr.bf16.mxu0 0
        %444 = vmatpush1.bf16.msra.mxu0 0
        %445 = vmatprep.subr.bf16.mxu0 0
        %446 = vmatpush1.bf16.msra.mxu0 0
        %447 = vmatprep.subr.bf16.mxu0 0
        %448 = vmatpush1.bf16.msra.mxu0 0
        %449 = vmatprep.subr.bf16.mxu0 0
        %450 = vmatpush1.bf16.msra.mxu0 0
        %451 = vmatprep.subr.bf16.mxu0 0
        %452 = vmatpush1.bf16.msra.mxu0 0
        %453 = vmatprep.subr.bf16.mxu0 0
        %454 = vmatpush1.bf16.msra.mxu0 0
        %455 = vmatprep.mubr.bf16.mxu0 0
        %456 = vmatmul.mubr.bf16.gmra.mrb[0].mxu0 %v417
        %v457 = vpop.f32.mrb[0].mxu0
        %v458 = vadd.f32 0.0, %v457
        %v459 = vpop.f32.mrb[0].mxu0
        %v460 = vpop.f32.mrb[0].mxu0
        %v461 = vpop.f32.mrb[0].mxu0
        %462 = vdwg.mxu0
        %v463 = vrcp.pop %v412
        %v464 = vmul.f32 %v458, %v463
        %v465 = vpack.c.bf16 %v464, %v464
        %s466 = smul.addr %s25, 4
        %s467 = scalar_lea.vmem %s4, %s466
        %v468 = vld [vmem:[%s467] sm:$0xf]
        %v470 = vsel %vm357, %v465, 0
        %v473 = vsel %vm419, %v468, 0
        %475 = vmatprep.subr.bf16.mxu0 0
        %476 = vmatpush1.bf16.msra.mxu0 %v473
        %477 = vmatprep.subr.bf16.mxu0 0
        %478 = vmatpush1.bf16.msra.mxu0 0
        %479 = vmatprep.subr.bf16.mxu0 0
        %480 = vmatpush1.bf16.msra.mxu0 0
        %481 = vmatprep.subr.bf16.mxu0 0
        %482 = vmatpush1.bf16.msra.mxu0 0
        %483 = vmatprep.subr.bf16.mxu0 0
        %484 = vmatpush1.bf16.msra.mxu0 0
        %485 = vmatprep.subr.bf16.mxu0 0
        %486 = vmatpush1.bf16.msra.mxu0 0
        %487 = vmatprep.subr.bf16.mxu0 0
        %488 = vmatpush1.bf16.msra.mxu0 0
        %489 = vmatprep.subr.bf16.mxu0 0
        %490 = vmatpush1.bf16.msra.mxu0 0
        %491 = vmatprep.subr.bf16.mxu0 0
        %492 = vmatpush1.bf16.msra.mxu0 0
        %493 = vmatprep.subr.bf16.mxu0 0
        %494 = vmatpush1.bf16.msra.mxu0 0
        %495 = vmatprep.subr.bf16.mxu0 0
        %496 = vmatpush1.bf16.msra.mxu0 0
        %497 = vmatprep.subr.bf16.mxu0 0
        %498 = vmatpush1.bf16.msra.mxu0 0
        %499 = vmatprep.subr.bf16.mxu0 0
        %500 = vmatpush1.bf16.msra.mxu0 0
        %501 = vmatprep.subr.bf16.mxu0 0
        %502 = vmatpush1.bf16.msra.mxu0 0
        %503 = vmatprep.subr.bf16.mxu0 0
        %504 = vmatpush1.bf16.msra.mxu0 0
        %505 = vmatprep.subr.bf16.mxu0 0
        %506 = vmatpush1.bf16.msra.mxu0 0
        %507 = vmatprep.mubr.bf16.mxu0 0
        %508 = vmatmul.mubr.bf16.gmra.mrb[0].mxu0 %v470
        %v509 = vpop.f32.mrb[0].mxu0
        %v510 = vadd.f32 0.0, %v509
        %v511 = vpop.f32.mrb[0].mxu0
        %v512 = vpop.f32.mrb[0].mxu0
        %v513 = vpop.f32.mrb[0].mxu0
        %514 = vdwg.mxu0
        %p515 = scmp.eq.s32.totalorder %s25, 0
        // Predicated region
        $region45: #{tpu_custom_call.1} parent=43 // pred_check
          %p516 = pneg %p515
        $region46: #{tpu_custom_call.1} parent=43 // pred_check_branch
          %518 = sbr.rel (%p516) target = $region48
        $region47: #{tpu_custom_call.1} parent=43 // pred_region
          %519 = vst.msk [vmem:[%s265] sm:$0xff] %vm302, 0.0
        $region48: #{tpu_custom_call.1} parent=43 // pred_fallthru
          _
        %v520 = vld [vmem:[%s265] sm:$0xff]
        %v521 = vadd.f32 %v520, %v510
        %522 = vst.msk [vmem:[%s265] sm:$0xff] %vm302, %v521
        %p523 = scmp.eq.s32.totalorder %s25, 3
        // Predicated region
        $region49: #{tpu_custom_call.1} parent=43 // pred_check
          %p524 = pneg %p523
        $region50: #{tpu_custom_call.1} parent=43 // pred_check_branch
          %526 = sbr.rel (%p524) target = $region52
        $region51: #{tpu_custom_call.1} parent=43 // pred_region
          %v527 = vld [vmem:[%s265] sm:$0xff]
          %v528 = vld [vmem:[%s5] sm:$0x1]
          %v530 = vlaneseq
          %v531 = vshrl.u32 %v530, 7
          %v532 = vsub.s32 0, %v531
          %v533 = vrot.slane %v528, %v532
          %v535 = vadd.f32 %v527, %v533
          %536 = vst.msk [vmem:[%s265] sm:$0xff] %vm302, %v535
        $region52: #{tpu_custom_call.1} parent=43 // pred_fallthru
          _
        %s537 = sand.u32 %s176, 1
        %s538 = scalar_lea.sflag [#allocation3], %s537
        %s539 = sand.u32 %s176, 1
        %s540 = smul.addr %s539, 8
        %s541 = scalar_lea.vmem [#allocation2], %s540
        // Predicated region
        $region53: #{tpu_custom_call.1} parent=43 // pred_check
          %p542 = pneg %p186
        $region54: #{tpu_custom_call.1} parent=43 // pred_check_branch
          %544 = sbr.rel (%p542) target = $region56
        $region55: #{tpu_custom_call.1} parent=43 // pred_region
          %s546 = ssub.s32 128, 128
          %547 = vsyncadd %s538, %s546
          %s548 = smul.addr %s24, 128
          %s549 = scalar_lea.hbm %s6, %s548
          %s551 = sshll.u32 %s541, 4
          %s552 = int_to_ptr.vmem [resolvable:$true] %s551
          %554 = dma.vmem_to_hbm [thread:$0]  %s552, 128, %s549, %s538
        $region56: #{tpu_custom_call.1} parent=43 // pred_fallthru
          _
      $region44: #{tpu_custom_call.1} parent=5 // pred_fallthru
        _
      %p555 = scmp.le.s32.totalorder 2, %s15
      // Predicated region
      $region57: #{tpu_custom_call.1} parent=5 // pred_check
        %p556 = pneg %p555
      $region58: #{tpu_custom_call.1} parent=5 // pred_check_branch
        %558 = sbr.rel (%p556) target = $region60
      $region59: #{tpu_custom_call.1} parent=5 // pred_region
        %s559 = ssub.s32 %s15, 2
        // Predicated region
        $region61: #{tpu_custom_call.1} parent=59 // pred_check
          %p560 = pneg %p192
        $region62: #{tpu_custom_call.1} parent=59 // pred_check_branch
          %562 = sbr.rel (%p560) target = $region64
        $region63: #{tpu_custom_call.1} parent=59 // pred_region
          %s563 = sand.u32 %s177, 1
          %s564 = scalar_lea.sflag [#allocation3], %s563
          %s565 = sand.u32 %s177, 1
          %s566 = smul.addr %s565, 8
          %s567 = scalar_lea.vmem [#allocation2], %s566
          %568 = dma.done %s564, 128
        $region64: #{tpu_custom_call.1} parent=59 // pred_fallthru
          _
      $region60: #{tpu_custom_call.1} parent=5 // pred_fallthru
        _
    $region6: #{tpu_custom_call.1} parent=1 // loop_footer
      %s19 = sadd.s32 1, %s15
    $region7: #{tpu_custom_call.1} parent=1 // loop_footer_branch
      %14 = sbr.rel target = $region3
    $region8: #{tpu_custom_call.1} parent=1 // loop_exit
      _
    %569 = vsyncpa [#allocation3], 1
    %s570 = scalar_lea.sflag [#allocation3], 1
    %571 = vsyncpa %s570, 1

</llo_original>
